<compile_context>
chip_gen: v5e
topology: v5e:2x2
jax: 0.10.0
libtpu: 0.0.40
codegen_flags: <defaults>
</compile_context>

<pallas_src>
import functools

import jax
import jax.numpy as jnp
from jax.experimental import pallas as pl
from jax.experimental.pallas import tpu as pltpu

LANE = 128  # TPU lane width; output padded to a multiple of this for dense stores.


def _round_up(x, m):
    return ((x + m - 1) // m) * m


def ngram_forward_kernel(idx_ref, emb_ref, w1_ref, b1_ref, w2_ref, b2_ref, o_ref,
                         *, vocab_size, context_size, embedding_dim):
    # idx_ref : SMEM (context_size,) int32        -- scalar-prefetched token ids
    # emb_ref : VMEM (vocab_size, embedding_dim)  -- whole table resident
    # w1_ref  : VMEM (context_size*embedding_dim, hidden)
    # b1_ref  : VMEM (1, hidden)
    # w2_ref  : VMEM (hidden, vocab_pad)
    # b2_ref  : VMEM (1, vocab_pad)
    # o_ref   : VMEM (1, vocab_pad)               -- lane-dense log-prob slab

    # Fused embedding gather + linear1:
    #   h = b1 + sum_i (onehot(tok_i) @ E) @ W1[i*D:(i+1)*D, :]
    lane_ids = jax.lax.broadcasted_iota(jnp.int32, (1, vocab_size), 1)
    h = b1_ref[...]
    for i in range(context_size):  # static, tiny loop (context_size = 4)
        tok = idx_ref[i]
        onehot = (lane_ids == tok).astype(jnp.float32)            # (1, vocab)
        x_i = jnp.dot(onehot, emb_ref[...],
                      preferred_element_type=jnp.float32)         # (1, emb_dim)
        w1_i = w1_ref[pl.ds(i * embedding_dim, embedding_dim), :]  # static slice
        h = h + jnp.dot(x_i, w1_i, preferred_element_type=jnp.float32)

    h = jnp.maximum(h, 0.0)  # ReLU

    # linear2 + masked, numerically-stable log-softmax on the padded slab.
    logits = jnp.dot(h, w2_ref[...], preferred_element_type=jnp.float32) + b2_ref[...]
    col = jax.lax.broadcasted_iota(jnp.int32, logits.shape, 1)
    logits = jnp.where(col < vocab_size, logits, -jnp.inf)        # mask pad lanes
    m = jnp.max(logits, axis=-1, keepdims=True)
    z = logits - m
    lse = jnp.log(jnp.sum(jnp.exp(z), axis=-1, keepdims=True))
    o_ref[...] = z - lse


@jax.jit
def ngram_forward(inputs, emb_table, w1, b1, w2, b2):
    """inputs: (context_size,) integer token ids -> (1, vocab) log-probs."""
    context_size = inputs.shape[0]
    vocab_size, embedding_dim = emb_table.shape
    hidden = w1.shape[1]
    vocab_pad = _round_up(vocab_size, LANE)

    b1_2d = b1.reshape(1, hidden)
    # Lane-dense output: pad the vocab axis of linear2 to a multiple of 128.
    w2_pad = jnp.pad(w2, ((0, 0), (0, vocab_pad - vocab_size)))
    b2_pad = jnp.pad(b2.reshape(1, -1), ((0, 0), (0, vocab_pad - vocab_size)))

    kernel = functools.partial(
        ngram_forward_kernel,
        vocab_size=vocab_size,
        context_size=context_size,
        embedding_dim=embedding_dim,
    )

    full = lambda shape: pl.BlockSpec(shape, lambda i, idx_ref: (0, 0))

    flops = (2 * context_size * (vocab_size * embedding_dim + embedding_dim * hidden)
             + 2 * hidden * vocab_pad)
    bytes_accessed = 4 * (vocab_size * embedding_dim
                          + context_size * embedding_dim * hidden + hidden
                          + hidden * vocab_pad + vocab_pad   # weights + biases
                          + vocab_pad) + 4 * context_size    # output + token ids

    out_pad = pl.pallas_call(
        kernel,
        out_shape=jax.ShapeDtypeStruct((1, vocab_pad), jnp.float32),
        grid_spec=pltpu.PrefetchScalarGridSpec(
            num_scalar_prefetch=1,
            grid=(1,),
            in_specs=[
                full(emb_table.shape),        # (vocab, emb_dim) resident in VMEM
                full(w1.shape),               # (context*emb_dim, hidden)
                full((1, hidden)),            # b1
                full((hidden, vocab_pad)),    # w2 (lane-padded)
                full((1, vocab_pad)),         # b2 (lane-padded)
            ],
            out_specs=full((1, vocab_pad)),
        ),
        compiler_params=pltpu.CompilerParams(
            dimension_semantics=("arbitrary",),
        ),
        cost_estimate=pl.CostEstimate(
            flops=flops,
            transcendentals=vocab_pad,
            bytes_accessed=bytes_accessed,
        ),
    )(inputs.astype(jnp.int32), emb_table, w1, b1_2d, w2_pad, b2_pad)

    return out_pad[:, :vocab_size]


def reference_forward(inputs, emb_table, w1, b1, w2, b2):
    """Pure-JAX reference mirroring the PyTorch module."""
    embeds = jnp.take(emb_table, inputs, axis=0).reshape(1, -1)
    h = jnp.maximum(embeds @ w1 + b1, 0.0)
    logits = h @ w2 + b2
    return jax.nn.log_softmax(logits, axis=1)


if __name__ == "__main__":
    # Small shapes consistent with the module's __init__.
    VOCAB_SIZE = 16
    EMBEDDING_DIM = 8
    CONTEXT_SIZE = 4
    HIDDEN = 128

    key = jax.random.PRNGKey(0)
    k_emb, k_w1, k_b1, k_w2, k_b2, k_in = jax.random.split(key, 6)

    # Deterministic parameter init (shapes match nn.Embedding / nn.Linear^T).
    emb_table = jax.random.normal(k_emb, (VOCAB_SIZE, EMBEDDING_DIM), jnp.float32)
    w1 = jax.random.normal(k_w1, (CONTEXT_SIZE * EMBEDDING_DIM, HIDDEN), jnp.float32) * 0.1
    b1 = jax.random.normal(k_b1, (HIDDEN,), jnp.float32) * 0.1
    w2 = jax.random.normal(k_w2, (HIDDEN, VOCAB_SIZE), jnp.float32) * 0.1
    b2 = jax.random.normal(k_b2, (VOCAB_SIZE,), jnp.float32) * 0.1

    # Example context of token ids.
    inputs = jax.random.randint(k_in, (CONTEXT_SIZE,), 0, VOCAB_SIZE, jnp.int32)

    log_probs = jax.block_until_ready(
        ngram_forward(inputs, emb_table, w1, b1, w2, b2))

    ref = reference_forward(inputs, emb_table, w1, b1, w2, b2)
    assert log_probs.shape == (1, VOCAB_SIZE)
    assert jnp.allclose(log_probs, ref, atol=1e-5, rtol=1e-5), "mismatch vs reference"

    print("KERNEL_OK")
</pallas_src>

<mosaic_0001>
module attributes {stable_mosaic.version = 11 : i64} {
  func.func @ngram_forward_kernel(%arg0: i32, %arg1: memref<4xi32, #tpu.memory_space<smem>>, %arg2: memref<16x8xf32, #tpu.memory_space<vmem>>, %arg3: memref<32x128xf32, #tpu.memory_space<vmem>>, %arg4: memref<1x128xf32, #tpu.memory_space<vmem>>, %arg5: memref<128x128xf32, #tpu.memory_space<vmem>>, %arg6: memref<1x128xf32, #tpu.memory_space<vmem>>, %arg7: memref<1x128xf32, #tpu.memory_space<vmem>>) attributes {dimension_semantics = [#tpu.dimension_semantics<arbitrary>], iteration_bounds = array<i64: 1>, scalar_prefetch = 1 : i64, scratch_operands = 0 : i64, tpu.core_type = #tpu.core_type<tc>, window_params = [{pipeline_mode = #tpu.pipeline_mode<synchronous>, transform_indices = @transform_0, window_bounds = array<i64: 16, 8>}, {pipeline_mode = #tpu.pipeline_mode<synchronous>, transform_indices = @transform_1, window_bounds = array<i64: 32, 128>}, {pipeline_mode = #tpu.pipeline_mode<synchronous>, transform_indices = @transform_2, window_bounds = array<i64: 1, 128>}, {pipeline_mode = #tpu.pipeline_mode<synchronous>, transform_indices = @transform_3, window_bounds = array<i64: 128, 128>}, {pipeline_mode = #tpu.pipeline_mode<synchronous>, transform_indices = @transform_4, window_bounds = array<i64: 1, 128>}, {pipeline_mode = #tpu.pipeline_mode<synchronous>, transform_indices = @transform_5, window_bounds = array<i64: 1, 128>}]} {
    %0 = tpu.iota {dimensions = array<i32: 1>} : vector<1x16xi32>
    %c0 = arith.constant 0 : index
    %c0_0 = arith.constant 0 : index
    %1 = vector.load %arg4[%c0, %c0_0] : memref<1x128xf32, #tpu.memory_space<vmem>>, vector<1x128xf32>
    %c0_1 = arith.constant 0 : index
    %2 = memref.load %arg1[%c0_1] : memref<4xi32, #tpu.memory_space<smem>>
    %3 = vector.broadcast %2 : i32 to vector<1x16xi32>
    %4 = arith.cmpi eq, %0, %3 : vector<1x16xi32>
    %5 = arith.extui %4 : vector<1x16xi1> to vector<1x16xi32>
    %6 = arith.sitofp %5 : vector<1x16xi32> to vector<1x16xf32>
    %c0_2 = arith.constant 0 : index
    %c0_3 = arith.constant 0 : index
    %7 = vector.load %arg2[%c0_2, %c0_3] : memref<16x8xf32, #tpu.memory_space<vmem>>, vector<16x8xf32>
    %cst = arith.constant dense<0.000000e+00> : vector<1x8xf32>
    %8 = tpu.matmul %6, %7, %cst {dimension_numbers = #tpu.dot_dimension_numbers<[1], [0], [0], [1], [0, 0, 1, 1], [], []>} : vector<1x16xf32>, vector<16x8xf32>, vector<1x8xf32> -> vector<1x8xf32>
    %c0_4 = arith.constant 0 : index
    %c0_5 = arith.constant 0 : index
    %9 = vector.load %arg3[%c0_4, %c0_5] : memref<32x128xf32, #tpu.memory_space<vmem>>, vector<8x128xf32>
    %cst_6 = arith.constant dense<0.000000e+00> : vector<1x128xf32>
    %10 = tpu.matmul %8, %9, %cst_6 {dimension_numbers = #tpu.dot_dimension_numbers<[1], [0], [0], [1], [0, 0, 1, 1], [], []>} : vector<1x8xf32>, vector<8x128xf32>, vector<1x128xf32> -> vector<1x128xf32>
    %11 = arith.addf %1, %10 : vector<1x128xf32>
    %c1 = arith.constant 1 : index
    %12 = memref.load %arg1[%c1] : memref<4xi32, #tpu.memory_space<smem>>
    %13 = vector.broadcast %12 : i32 to vector<1x16xi32>
    %14 = arith.cmpi eq, %0, %13 : vector<1x16xi32>
    %15 = arith.extui %14 : vector<1x16xi1> to vector<1x16xi32>
    %16 = arith.sitofp %15 : vector<1x16xi32> to vector<1x16xf32>
    %c0_7 = arith.constant 0 : index
    %c0_8 = arith.constant 0 : index
    %17 = vector.load %arg2[%c0_7, %c0_8] : memref<16x8xf32, #tpu.memory_space<vmem>>, vector<16x8xf32>
    %cst_9 = arith.constant dense<0.000000e+00> : vector<1x8xf32>
    %18 = tpu.matmul %16, %17, %cst_9 {dimension_numbers = #tpu.dot_dimension_numbers<[1], [0], [0], [1], [0, 0, 1, 1], [], []>} : vector<1x16xf32>, vector<16x8xf32>, vector<1x8xf32> -> vector<1x8xf32>
    %c8 = arith.constant 8 : index
    %c0_10 = arith.constant 0 : index
    %19 = vector.load %arg3[%c8, %c0_10] : memref<32x128xf32, #tpu.memory_space<vmem>>, vector<8x128xf32>
    %cst_11 = arith.constant dense<0.000000e+00> : vector<1x128xf32>
    %20 = tpu.matmul %18, %19, %cst_11 {dimension_numbers = #tpu.dot_dimension_numbers<[1], [0], [0], [1], [0, 0, 1, 1], [], []>} : vector<1x8xf32>, vector<8x128xf32>, vector<1x128xf32> -> vector<1x128xf32>
    %21 = arith.addf %11, %20 : vector<1x128xf32>
    %c2 = arith.constant 2 : index
    %22 = memref.load %arg1[%c2] : memref<4xi32, #tpu.memory_space<smem>>
    %23 = vector.broadcast %22 : i32 to vector<1x16xi32>
    %24 = arith.cmpi eq, %0, %23 : vector<1x16xi32>
    %25 = arith.extui %24 : vector<1x16xi1> to vector<1x16xi32>
    %26 = arith.sitofp %25 : vector<1x16xi32> to vector<1x16xf32>
    %c0_12 = arith.constant 0 : index
    %c0_13 = arith.constant 0 : index
    %27 = vector.load %arg2[%c0_12, %c0_13] : memref<16x8xf32, #tpu.memory_space<vmem>>, vector<16x8xf32>
    %cst_14 = arith.constant dense<0.000000e+00> : vector<1x8xf32>
    %28 = tpu.matmul %26, %27, %cst_14 {dimension_numbers = #tpu.dot_dimension_numbers<[1], [0], [0], [1], [0, 0, 1, 1], [], []>} : vector<1x16xf32>, vector<16x8xf32>, vector<1x8xf32> -> vector<1x8xf32>
    %c16 = arith.constant 16 : index
    %c0_15 = arith.constant 0 : index
    %29 = vector.load %arg3[%c16, %c0_15] : memref<32x128xf32, #tpu.memory_space<vmem>>, vector<8x128xf32>
    %cst_16 = arith.constant dense<0.000000e+00> : vector<1x128xf32>
    %30 = tpu.matmul %28, %29, %cst_16 {dimension_numbers = #tpu.dot_dimension_numbers<[1], [0], [0], [1], [0, 0, 1, 1], [], []>} : vector<1x8xf32>, vector<8x128xf32>, vector<1x128xf32> -> vector<1x128xf32>
    %31 = arith.addf %21, %30 : vector<1x128xf32>
    %c3 = arith.constant 3 : index
    %32 = memref.load %arg1[%c3] : memref<4xi32, #tpu.memory_space<smem>>
    %33 = vector.broadcast %32 : i32 to vector<1x16xi32>
    %34 = arith.cmpi eq, %0, %33 : vector<1x16xi32>
    %35 = arith.extui %34 : vector<1x16xi1> to vector<1x16xi32>
    %36 = arith.sitofp %35 : vector<1x16xi32> to vector<1x16xf32>
    %c0_17 = arith.constant 0 : index
    %c0_18 = arith.constant 0 : index
    %37 = vector.load %arg2[%c0_17, %c0_18] : memref<16x8xf32, #tpu.memory_space<vmem>>, vector<16x8xf32>
    %cst_19 = arith.constant dense<0.000000e+00> : vector<1x8xf32>
    %38 = tpu.matmul %36, %37, %cst_19 {dimension_numbers = #tpu.dot_dimension_numbers<[1], [0], [0], [1], [0, 0, 1, 1], [], []>} : vector<1x16xf32>, vector<16x8xf32>, vector<1x8xf32> -> vector<1x8xf32>
    %c24 = arith.constant 24 : index
    %c0_20 = arith.constant 0 : index
    %39 = vector.load %arg3[%c24, %c0_20] : memref<32x128xf32, #tpu.memory_space<vmem>>, vector<8x128xf32>
    %cst_21 = arith.constant dense<0.000000e+00> : vector<1x128xf32>
    %40 = tpu.matmul %38, %39, %cst_21 {dimension_numbers = #tpu.dot_dimension_numbers<[1], [0], [0], [1], [0, 0, 1, 1], [], []>} : vector<1x8xf32>, vector<8x128xf32>, vector<1x128xf32> -> vector<1x128xf32>
    %41 = arith.addf %31, %40 : vector<1x128xf32>
    %cst_22 = arith.constant 0.000000e+00 : f32
    %42 = vector.broadcast %cst_22 : f32 to vector<1x128xf32>
    %43 = arith.maximumf %41, %42 : vector<1x128xf32>
    %c0_23 = arith.constant 0 : index
    %c0_24 = arith.constant 0 : index
    %44 = vector.load %arg5[%c0_23, %c0_24] : memref<128x128xf32, #tpu.memory_space<vmem>>, vector<128x128xf32>
    %cst_25 = arith.constant dense<0.000000e+00> : vector<1x128xf32>
    %45 = tpu.matmul %43, %44, %cst_25 {dimension_numbers = #tpu.dot_dimension_numbers<[1], [0], [0], [1], [0, 0, 1, 1], [], []>} : vector<1x128xf32>, vector<128x128xf32>, vector<1x128xf32> -> vector<1x128xf32>
    %c0_26 = arith.constant 0 : index
    %c0_27 = arith.constant 0 : index
    %46 = vector.load %arg6[%c0_26, %c0_27] : memref<1x128xf32, #tpu.memory_space<vmem>>, vector<1x128xf32>
    %47 = arith.addf %45, %46 : vector<1x128xf32>
    %48 = tpu.iota {dimensions = array<i32: 1>} : vector<1x128xi32>
    %c16_i32 = arith.constant 16 : i32
    %49 = vector.broadcast %c16_i32 : i32 to vector<1x128xi32>
    %50 = arith.cmpi slt, %48, %49 : vector<1x128xi32>
    %cst_28 = arith.constant 0xFF800000 : f32
    %51 = vector.broadcast %cst_28 : f32 to vector<1x128xf32>
    %52 = arith.select %50, %47, %51 : vector<1x128xi1>, vector<1x128xf32>
    %cst_29 = arith.constant dense<0xFF800000> : vector<1xf32>
    %53 = vector.multi_reduction <maximumf>, %52, %cst_29 [1] : vector<1x128xf32> to vector<1xf32>
    %54 = vector.shape_cast %53 : vector<1xf32> to vector<1x1xf32>
    %55 = vector.broadcast %54 : vector<1x1xf32> to vector<1x128xf32>
    %56 = arith.subf %52, %55 : vector<1x128xf32>
    %57 = math.exp %56 : vector<1x128xf32>
    %cst_30 = arith.constant dense<0.000000e+00> : vector<1xf32>
    %58 = vector.multi_reduction <add>, %57, %cst_30 [1] : vector<1x128xf32> to vector<1xf32>
    %59 = vector.shape_cast %58 : vector<1xf32> to vector<1x1xf32>
    %60 = math.log %59 : vector<1x1xf32>
    %61 = vector.broadcast %60 : vector<1x1xf32> to vector<1x128xf32>
    %62 = arith.subf %56, %61 : vector<1x128xf32>
    %c0_31 = arith.constant 0 : index
    %c0_32 = arith.constant 0 : index
    %63 = vector.load %arg7[%c0_31, %c0_32] : memref<1x128xf32, #tpu.memory_space<vmem>>, vector<1x128xf32>
    tpu.vector_store %arg7[%c0_31, %c0_32], %62 {strides = array<i32>} : memref<1x128xf32, #tpu.memory_space<vmem>>, vector<1x128xf32>,
    return
  }
  func.func @transform_0(%arg0: i32, %arg1: memref<4xi32, #tpu.memory_space<smem>>) -> (i32, i32) {
    %c0_i32 = arith.constant 0 : i32
    %c0_i32_0 = arith.constant 0 : i32
    %c0_i32_1 = arith.constant 0 : i32
    return %c0_i32, %c0_i32_0 : i32, i32
  }
  func.func @transform_1(%arg0: i32, %arg1: memref<4xi32, #tpu.memory_space<smem>>) -> (i32, i32) {
    %c0_i32 = arith.constant 0 : i32
    %c0_i32_0 = arith.constant 0 : i32
    %c0_i32_1 = arith.constant 0 : i32
    return %c0_i32, %c0_i32_0 : i32, i32
  }
  func.func @transform_2(%arg0: i32, %arg1: memref<4xi32, #tpu.memory_space<smem>>) -> (i32, i32) {
    %c0_i32 = arith.constant 0 : i32
    %c0_i32_0 = arith.constant 0 : i32
    %c0_i32_1 = arith.constant 0 : i32
    return %c0_i32, %c0_i32_0 : i32, i32
  }
  func.func @transform_3(%arg0: i32, %arg1: memref<4xi32, #tpu.memory_space<smem>>) -> (i32, i32) {
    %c0_i32 = arith.constant 0 : i32
    %c0_i32_0 = arith.constant 0 : i32
    %c0_i32_1 = arith.constant 0 : i32
    return %c0_i32, %c0_i32_0 : i32, i32
  }
  func.func @transform_4(%arg0: i32, %arg1: memref<4xi32, #tpu.memory_space<smem>>) -> (i32, i32) {
    %c0_i32 = arith.constant 0 : i32
    %c0_i32_0 = arith.constant 0 : i32
    %c0_i32_1 = arith.constant 0 : i32
    return %c0_i32, %c0_i32_0 : i32, i32
  }
  func.func @transform_5(%arg0: i32, %arg1: memref<4xi32, #tpu.memory_space<smem>>) -> (i32, i32) {
    %c0_i32 = arith.constant 0 : i32
    %c0_i32_0 = arith.constant 0 : i32
    %c0_i32_1 = arith.constant 0 : i32
    return %c0_i32, %c0_i32_0 : i32, i32
  }
}

</mosaic_0001>

<llo_original>
// kernel: ngram_forward.1
$region0: #{ngram_forward.1}
  #allocation0 [shape = 'u32[]', space=smem, size = 0x4, offset = 0x4, fixed_abs, tag = 'smem constant byte address 0x4 - core index']
  #allocation1 [shape = 'u32[72,128]{1,0:T(1,128)}', space=vmem, size = 0x9000, scoped, tag = 'internal scratch']
  #allocation2 [shape = 's32[1]{0}', space=sflag, size = 0x4, scoped, tag = 'scoped memory for ngram_forward.1']
  #allocation3 [shape = 'u8[512]{0}', space=smem, size = 0x200, scoped, tag = 'prefetched SMEM operand 0']
  %s0 = inlined_call_operand.vmem [shape: s32[4], index: 0, kind: input, shape index: {}]
  %s1 = inlined_call_operand.vmem [shape: f32[16,8], index: 1, kind: input, shape index: {}]
  %s2 = inlined_call_operand.vmem [shape: f32[32,128], index: 2, kind: input, shape index: {}]
  %s3 = inlined_call_operand.vmem [shape: f32[1,128], index: 3, kind: input, shape index: {}]
  %s4 = inlined_call_operand.vmem [shape: f32[128,128], index: 4, kind: input, shape index: {}]
  %s5 = inlined_call_operand.vmem [shape: f32[1,128], index: 5, kind: input, shape index: {}]
  %s6 = inlined_call_operand.hbm [shape: f32[1,128], index: 6, kind: output, shape index: {}]
  %s7 = sld [smem:[#allocation0]]
  $region30: #{ngram_forward.1} parent=0
    _
  %s9 = ssub.s32 1, %s7
  %s10 = scalar_select 0, %s9, %s7
  %s12 = sshll.u32 %s0, 4
  %s13 = int_to_ptr.vmem [resolvable:$true] %s12
  %15 = dma.vmem_to_smem %s13, 16, [#allocation3], [#allocation2]
  %17 = dma.done [#allocation2], 16
  %18 = sfence
  $region1: #{ngram_forward.1} parent=0
    #allocation4 [shape = 'u8[512]{0}', space=vmem, size = 0x400, scoped, tag = 'output window, operand 0, single buffered']
    #allocation5 [shape = 's32[1]{0}', space=sflag, size = 0x4, scoped, tag = 'scoped memory for ngram_forward.1']
    %19 = vsyncpa [#allocation5], 0
    // Predicated region
    $region2: #{ngram_forward.1} parent=1 // pred_check
      _
    $region3: #{ngram_forward.1} parent=1 // pred_check_branch
      %21 = sbr.rel (0) target = $region5
    $region4: #{ngram_forward.1} parent=1 // pred_region
      _
    $region5: #{ngram_forward.1} parent=1 // pred_fallthru
      _
    // Predicated region
    $region6: #{ngram_forward.1} parent=1 // pred_check
      _
    $region7: #{ngram_forward.1} parent=1 // pred_check_branch
      %23 = sbr.rel (0) target = $region9
    $region8: #{ngram_forward.1} parent=1 // pred_region
      _
    $region9: #{ngram_forward.1} parent=1 // pred_fallthru
      _
    // Predicated region
    $region10: #{ngram_forward.1} parent=1 // pred_check
      _
    $region11: #{ngram_forward.1} parent=1 // pred_check_branch
      %25 = sbr.rel (0) target = $region13
    $region12: #{ngram_forward.1} parent=1 // pred_region
      _
    $region13: #{ngram_forward.1} parent=1 // pred_fallthru
      _
    // Predicated region
    $region14: #{ngram_forward.1} parent=1 // pred_check
      _
    $region15: #{ngram_forward.1} parent=1 // pred_check_branch
      %27 = sbr.rel (0) target = $region17
    $region16: #{ngram_forward.1} parent=1 // pred_region
      _
    $region17: #{ngram_forward.1} parent=1 // pred_fallthru
      _
    // Predicated region
    $region18: #{ngram_forward.1} parent=1 // pred_check
      _
    $region19: #{ngram_forward.1} parent=1 // pred_check_branch
      %29 = sbr.rel (0) target = $region21
    $region20: #{ngram_forward.1} parent=1 // pred_region
      _
    $region21: #{ngram_forward.1} parent=1 // pred_fallthru
      _
    %v30 = vlaneseq
    %v31 = vand.u32 %v30, 127
    %v32 = vld [vmem:[%s3] sm:$0x1]
    %s33 = sld [smem:[#allocation3]]
    %v34 = vstv %s33
    %vm35 = vcmp.eq.s32.totalorder %v31, %v34
    %v36 = vsel %vm35, 1, 0
    %v37 = vcvt.s32.f32 %v36
    %v38 = vld [vmem:[%s1] sm:$0xff]
    %v39 = vld [vmem:[%s1 + $0x8] sm:$0xff]
    %vm40 = vcmask 130048
    %v42 = vsel %vm40, %v37, 0
    %44 = vmatpush.msra.mxu0 0.0
    %45 = vmatpush.msra.mxu0 0.0
    %46 = vmatpush.msra.mxu0 0.0
    %47 = vmatpush.msra.mxu0 0.0
    %48 = vmatpush.msra.mxu0 0.0
    %49 = vmatpush.msra.mxu0 0.0
    %50 = vmatpush.msra.mxu0 0.0
    %51 = vmatpush.msra.mxu0 0.0
    %52 = vmatpush.msra.mxu0 0.0
    %53 = vmatpush.msra.mxu0 0.0
    %54 = vmatpush.msra.mxu0 0.0
    %55 = vmatpush.msra.mxu0 0.0
    %56 = vmatpush.msra.mxu0 0.0
    %57 = vmatpush.msra.mxu0 0.0
    %58 = vmatpush.msra.mxu0 %v39
    %59 = vmatpush.msra.mxu0 %v38
    %60 = vmatmul.f32.gmra.mxu0 %v42
    %v61 = vpop.f32.mrf.mxu0
    %v62 = vadd.f32 0.0, %v61
    %63 = vdwg.mxu0
    %v64 = vld [vmem:[%s2] sm:$0xff]
    %vm65 = vcmask 64512
    %v67 = vsel %vm65, %v62, 0
    %69 = vmatpush.msra.mxu0 0.0
    %70 = vmatpush.msra.mxu0 0.0
    %71 = vmatpush.msra.mxu0 0.0
    %72 = vmatpush.msra.mxu0 0.0
    %73 = vmatpush.msra.mxu0 0.0
    %74 = vmatpush.msra.mxu0 0.0
    %75 = vmatpush.msra.mxu0 0.0
    %76 = vmatpush.msra.mxu0 0.0
    %77 = vmatpush.msra.mxu0 0.0
    %78 = vmatpush.msra.mxu0 0.0
    %79 = vmatpush.msra.mxu0 0.0
    %80 = vmatpush.msra.mxu0 0.0
    %81 = vmatpush.msra.mxu0 0.0
    %82 = vmatpush.msra.mxu0 0.0
    %83 = vmatpush.msra.mxu0 0.0
    %84 = vmatpush.msra.mxu0 %v64
    %85 = vmatmul.f32.gmra.mxu0 %v67
    %v86 = vpop.f32.mrf.mxu0
    %v87 = vadd.f32 0.0, %v86
    %88 = vdwg.mxu0
    %v89 = vadd.f32 %v32, %v87
    %s90 = sld [smem:[#allocation3 + $0x1]]
    %v91 = vstv %s90
    %vm92 = vcmp.eq.s32.totalorder %v31, %v91
    %v93 = vsel %vm92, 1, 0
    %v94 = vcvt.s32.f32 %v93
    %v96 = vsel %vm40, %v94, 0
    %98 = vmatpush.msra.mxu0 0.0
    %99 = vmatpush.msra.mxu0 0.0
    %100 = vmatpush.msra.mxu0 0.0
    %101 = vmatpush.msra.mxu0 0.0
    %102 = vmatpush.msra.mxu0 0.0
    %103 = vmatpush.msra.mxu0 0.0
    %104 = vmatpush.msra.mxu0 0.0
    %105 = vmatpush.msra.mxu0 0.0
    %106 = vmatpush.msra.mxu0 0.0
    %107 = vmatpush.msra.mxu0 0.0
    %108 = vmatpush.msra.mxu0 0.0
    %109 = vmatpush.msra.mxu0 0.0
    %110 = vmatpush.msra.mxu0 0.0
    %111 = vmatpush.msra.mxu0 0.0
    %112 = vmatpush.msra.mxu0 %v39
    %113 = vmatpush.msra.mxu0 %v38
    %114 = vmatmul.f32.gmra.mxu0 %v96
    %v115 = vpop.f32.mrf.mxu0
    %v116 = vadd.f32 0.0, %v115
    %117 = vdwg.mxu0
    %v118 = vld [vmem:[%s2 + $0x8] sm:$0xff]
    %v120 = vsel %vm65, %v116, 0
    %122 = vmatpush.msra.mxu0 0.0
    %123 = vmatpush.msra.mxu0 0.0
    %124 = vmatpush.msra.mxu0 0.0
    %125 = vmatpush.msra.mxu0 0.0
    %126 = vmatpush.msra.mxu0 0.0
    %127 = vmatpush.msra.mxu0 0.0
    %128 = vmatpush.msra.mxu0 0.0
    %129 = vmatpush.msra.mxu0 0.0
    %130 = vmatpush.msra.mxu0 0.0
    %131 = vmatpush.msra.mxu0 0.0
    %132 = vmatpush.msra.mxu0 0.0
    %133 = vmatpush.msra.mxu0 0.0
    %134 = vmatpush.msra.mxu0 0.0
    %135 = vmatpush.msra.mxu0 0.0
    %136 = vmatpush.msra.mxu0 0.0
    %137 = vmatpush.msra.mxu0 %v118
    %138 = vmatmul.f32.gmra.mxu0 %v120
    %v139 = vpop.f32.mrf.mxu0
    %v140 = vadd.f32 0.0, %v139
    %141 = vdwg.mxu0
    %v142 = vadd.f32 %v89, %v140
    %s143 = sld [smem:[#allocation3 + $0x2]]
    %v144 = vstv %s143
    %vm145 = vcmp.eq.s32.totalorder %v31, %v144
    %v146 = vsel %vm145, 1, 0
    %v147 = vcvt.s32.f32 %v146
    %v149 = vsel %vm40, %v147, 0
    %151 = vmatpush.msra.mxu0 0.0
    %152 = vmatpush.msra.mxu0 0.0
    %153 = vmatpush.msra.mxu0 0.0
    %154 = vmatpush.msra.mxu0 0.0
    %155 = vmatpush.msra.mxu0 0.0
    %156 = vmatpush.msra.mxu0 0.0
    %157 = vmatpush.msra.mxu0 0.0
    %158 = vmatpush.msra.mxu0 0.0
    %159 = vmatpush.msra.mxu0 0.0
    %160 = vmatpush.msra.mxu0 0.0
    %161 = vmatpush.msra.mxu0 0.0
    %162 = vmatpush.msra.mxu0 0.0
    %163 = vmatpush.msra.mxu0 0.0
    %164 = vmatpush.msra.mxu0 0.0
    %165 = vmatpush.msra.mxu0 %v39
    %166 = vmatpush.msra.mxu0 %v38
    %167 = vmatmul.f32.gmra.mxu0 %v149
    %v168 = vpop.f32.mrf.mxu0
    %v169 = vadd.f32 0.0, %v168
    %170 = vdwg.mxu0
    %v171 = vld [vmem:[%s2 + $0x10] sm:$0xff]
    %v173 = vsel %vm65, %v169, 0
    %175 = vmatpush.msra.mxu0 0.0
    %176 = vmatpush.msra.mxu0 0.0
    %177 = vmatpush.msra.mxu0 0.0
    %178 = vmatpush.msra.mxu0 0.0
    %179 = vmatpush.msra.mxu0 0.0
    %180 = vmatpush.msra.mxu0 0.0
    %181 = vmatpush.msra.mxu0 0.0
    %182 = vmatpush.msra.mxu0 0.0
    %183 = vmatpush.msra.mxu0 0.0
    %184 = vmatpush.msra.mxu0 0.0
    %185 = vmatpush.msra.mxu0 0.0
    %186 = vmatpush.msra.mxu0 0.0
    %187 = vmatpush.msra.mxu0 0.0
    %188 = vmatpush.msra.mxu0 0.0
    %189 = vmatpush.msra.mxu0 0.0
    %190 = vmatpush.msra.mxu0 %v171
    %191 = vmatmul.f32.gmra.mxu0 %v173
    %v192 = vpop.f32.mrf.mxu0
    %v193 = vadd.f32 0.0, %v192
    %194 = vdwg.mxu0
    %v195 = vadd.f32 %v142, %v193
    %s196 = sld [smem:[#allocation3 + $0x3]]
    %v197 = vstv %s196
    %vm198 = vcmp.eq.s32.totalorder %v31, %v197
    %v199 = vsel %vm198, 1, 0
    %v200 = vcvt.s32.f32 %v199
    %v202 = vsel %vm40, %v200, 0
    %204 = vmatpush.msra.mxu0 0.0
    %205 = vmatpush.msra.mxu0 0.0
    %206 = vmatpush.msra.mxu0 0.0
    %207 = vmatpush.msra.mxu0 0.0
    %208 = vmatpush.msra.mxu0 0.0
    %209 = vmatpush.msra.mxu0 0.0
    %210 = vmatpush.msra.mxu0 0.0
    %211 = vmatpush.msra.mxu0 0.0
    %212 = vmatpush.msra.mxu0 0.0
    %213 = vmatpush.msra.mxu0 0.0
    %214 = vmatpush.msra.mxu0 0.0
    %215 = vmatpush.msra.mxu0 0.0
    %216 = vmatpush.msra.mxu0 0.0
    %217 = vmatpush.msra.mxu0 0.0
    %218 = vmatpush.msra.mxu0 %v39
    %219 = vmatpush.msra.mxu0 %v38
    %220 = vmatmul.f32.gmra.mxu0 %v202
    %v221 = vpop.f32.mrf.mxu0
    %v222 = vadd.f32 0.0, %v221
    %223 = vdwg.mxu0
    %v224 = vld [vmem:[%s2 + $0x18] sm:$0xff]
    %v226 = vsel %vm65, %v222, 0
    %228 = vmatpush.msra.mxu0 0.0
    %229 = vmatpush.msra.mxu0 0.0
    %230 = vmatpush.msra.mxu0 0.0
    %231 = vmatpush.msra.mxu0 0.0
    %232 = vmatpush.msra.mxu0 0.0
    %233 = vmatpush.msra.mxu0 0.0
    %234 = vmatpush.msra.mxu0 0.0
    %235 = vmatpush.msra.mxu0 0.0
    %236 = vmatpush.msra.mxu0 0.0
    %237 = vmatpush.msra.mxu0 0.0
    %238 = vmatpush.msra.mxu0 0.0
    %239 = vmatpush.msra.mxu0 0.0
    %240 = vmatpush.msra.mxu0 0.0
    %241 = vmatpush.msra.mxu0 0.0
    %242 = vmatpush.msra.mxu0 0.0
    %243 = vmatpush.msra.mxu0 %v224
    %244 = vmatmul.f32.gmra.mxu0 %v226
    %v245 = vpop.f32.mrf.mxu0
    %v246 = vadd.f32 0.0, %v245
    %247 = vdwg.mxu0
    %v248 = vadd.f32 %v195, %v246
    %v249 = vmax.f32 %v248, 0.0
    %v250 = vld [vmem:[%s4] sm:$0xff]
    %v251 = vld [vmem:[%s4 + $0x8] sm:$0xff]
    %v252 = vld [vmem:[%s4 + $0x10] sm:$0xff]
    %v253 = vld [vmem:[%s4 + $0x18] sm:$0xff]
    %v254 = vld [vmem:[%s4 + $0x20] sm:$0xff]
    %v255 = vld [vmem:[%s4 + $0x28] sm:$0xff]
    %v256 = vld [vmem:[%s4 + $0x30] sm:$0xff]
    %v257 = vld [vmem:[%s4 + $0x38] sm:$0xff]
    %v258 = vld [vmem:[%s4 + $0x40] sm:$0xff]
    %v259 = vld [vmem:[%s4 + $0x48] sm:$0xff]
    %v260 = vld [vmem:[%s4 + $0x50] sm:$0xff]
    %v261 = vld [vmem:[%s4 + $0x58] sm:$0xff]
    %v262 = vld [vmem:[%s4 + $0x60] sm:$0xff]
    %v263 = vld [vmem:[%s4 + $0x68] sm:$0xff]
    %v264 = vld [vmem:[%s4 + $0x70] sm:$0xff]
    %v265 = vld [vmem:[%s4 + $0x78] sm:$0xff]
    %v266 = vld [vmem:[%s5] sm:$0x1]
    %267 = vmatpush.msra.mxu0 %v265
    %268 = vmatpush.msra.mxu0 %v264
    %269 = vmatpush.msra.mxu0 %v263
    %270 = vmatpush.msra.mxu0 %v262
    %271 = vmatpush.msra.mxu0 %v261
    %272 = vmatpush.msra.mxu0 %v260
    %273 = vmatpush.msra.mxu0 %v259
    %274 = vmatpush.msra.mxu0 %v258
    %275 = vmatpush.msra.mxu0 %v257
    %276 = vmatpush.msra.mxu0 %v256
    %277 = vmatpush.msra.mxu0 %v255
    %278 = vmatpush.msra.mxu0 %v254
    %279 = vmatpush.msra.mxu0 %v253
    %280 = vmatpush.msra.mxu0 %v252
    %281 = vmatpush.msra.mxu0 %v251
    %282 = vmatpush.msra.mxu0 %v250
    %283 = vmatmul.f32.gmra.mxu0 %v249
    %v284 = vpop.f32.mrf.mxu0
    %v285 = vadd.f32 %v266, %v284
    %286 = vdwg.mxu0
    %vm287 = vcmp.lt.s32.totalorder %v31, 16
    %v288 = vsel %vm287, %v285, -inf
    %vm289 = vcmask 1040384
    %v290 = vsel %vm289, %v288, -inf
    %291 = vmax.xlane.f32.xlu0 %v290
    %v292 = vpop.xlane.xlu0 %291
    %v293 = vsub.f32 %v288, %v292
    %v294 = vmul.f32 %v293, 1.442695
    %v295 = vpow.pop %v294
    %v296 = vsel %vm289, %v295, 0.0
    %297 = vadd.xlane.f32.xlu0 %v296
    %v298 = vpop.xlane.xlu0 %297
    %v299 = vlog2.pop %v298
    %v300 = vmul.f32 %v299, 0.6931472
    %v301 = vsub.f32 %v293, %v300
    %302 = vst [vmem:[#allocation4] sm:$0x1] %v301
    // Predicated region
    $region22: #{ngram_forward.1} parent=1 // pred_check
      _
    $region23: #{ngram_forward.1} parent=1 // pred_check_branch
      %304 = sbr.rel (0) target = $region25
    $region24: #{ngram_forward.1} parent=1 // pred_region
      %306 = vsyncadd [#allocation5], 0
      %s308 = sshll.u32 [#allocation4], 4
      %s309 = int_to_ptr.vmem [resolvable:$true] %s308
      %s310 = sshll.u32 %s6, 4
      %s311 = int_to_ptr.hbm [resolvable:$true] %s310
      %313 = dma.vmem_to_hbm [thread:$0]  %s309, 16, %s311, [#allocation5]
    $region25: #{ngram_forward.1} parent=1 // pred_fallthru
      _
    // Predicated region
    $region26: #{ngram_forward.1} parent=1 // pred_check
      _
    $region27: #{ngram_forward.1} parent=1 // pred_check_branch
      %315 = sbr.rel (0) target = $region29
    $region28: #{ngram_forward.1} parent=1 // pred_region
      %317 = dma.done [#allocation5], 16
    $region29: #{ngram_forward.1} parent=1 // pred_fallthru
      _
    %318 = vsyncpa [#allocation5], 1

</llo_original>
